<compile_context>
chip_gen: v6e
topology: v6e:2x2x1
jax: 0.10.0
libtpu: 0.0.40
codegen_flags: <defaults>
</compile_context>

<pallas_src>
import functools

import jax
import jax.numpy as jnp
from jax.experimental import pallas as pl
from jax.experimental.pallas import tpu as pltpu


def encoder_kernel(
    x2d_ref,    # (T*BP, 2F) bf16; row t*BP+b = [x[t, b] | x[T-1-t, b]]
    w_in_ref,   # (2F, 8H)  bf16; interleaved input->gate weights (fwd rows 0:F, bwd F:2F)
    w_hh_ref,   # (2H, 8H)  bf16; block-diagonal recurrent weights (both directions)
    bias_ref,   # (1, 8H)   f32; combined gate bias (bias_ih + bias_hh, both directions)
    wout_ref,   # (2H, 2Z)  bf16; output linear weight (pre-transposed)
    bout_ref,   # (1, 2Z)   f32; output linear bias
    eps_ref,    # (BP, Z)   f32; N(0,1) noise for reparameterization
    out_ref,    # (BP, 3Z)  f32; out: [z | z_mean | z_logvar]
):
    BP, Z = eps_ref.shape
    T = x2d_ref.shape[0] // BP
    H2 = w_hh_ref.shape[0]        # 2H  (fwd | bwd)

    w_hh = w_hh_ref[...]          # (2H, 8H) bf16 -> 8 live vregs at toy H; fine.
    # TODO(synk): at production H (>=256) read w_hh inside the loop / switch to
    #             lax.fori_loop(unroll=True) (or pltpu.matmul_push_rhs) to bound
    #             live ranges and avoid spills.

    # ---- input projection for both directions & all timesteps: ONE matmul,
    #      hoisted out of the serial recurrence, bias folded in.
    #      Gate column blocks (each 2H wide): [ i | f | o | g ]; i/f/o columns
    #      (weights AND bias) were pre-scaled by 0.5 in the wrapper. ----
    gates_x = (
        jnp.dot(x2d_ref[...], w_in_ref[...], preferred_element_type=jnp.float32)
        + bias_ref[...]
    )                                                   # (T*BP, 8H) f32

    h = jnp.zeros((BP, H2), jnp.float32)                # [h_fwd | h_bwd]
    c = jnp.zeros((BP, H2), jnp.float32)                # [c_fwd | c_bwd]

    # ---- fully unrolled recurrence (T small & static): one block-diagonal MXU
    #      push + ONE full-width tanh (EUP) per step; sublane-aligned slices. ----
    H2_3 = 3 * H2
    for t in range(T):
        gates = gates_x[t * BP:(t + 1) * BP, :] + jnp.dot(
            h.astype(jnp.bfloat16), w_hh, preferred_element_type=jnp.float32)
        t_all = jnp.tanh(gates)                         # single EUP pass over (BP, 8H)
        ifo = 0.5 * (t_all[:, :H2_3] + 1.0)             # == sigmoid of unscaled i/f/o gates
        i_g = ifo[:, 0 * H2:1 * H2]
        f_g = ifo[:, 1 * H2:2 * H2]
        o_g = ifo[:, 2 * H2:3 * H2]
        g_g = t_all[:, H2_3:]
        c = f_g * c + i_g * g_g
        h = o_g * jnp.tanh(c)

    # h already equals concat([h_fwd_final, h_bwd_final], -1)  (no concat needed)
    lin = (
        jnp.dot(h.astype(jnp.bfloat16), wout_ref[...],
                preferred_element_type=jnp.float32)
        + bout_ref[...]
    )                                                   # (BP, 2Z) = [mean | logvar]
    z_mean = lin[:, :Z]
    z_logvar = lin[:, Z:]
    z = z_mean + jnp.exp(0.5 * z_logvar) * eps_ref[...]
    out_ref[...] = jnp.concatenate([z, lin], axis=-1)   # single lane-dense store


# PyTorch LSTM gate order is (i, f, g, o); kernel column order is (i, f, o, g)
# with the 0.5 of sigmoid(x) = 0.5*(tanh(0.5*x)+1) folded into i/f/o columns.
_GATE_ORDER = (0, 1, 3, 2)
_GATE_SCALE = (0.5, 0.5, 0.5, 1.0)


def _interleave_gate_blocks(w_f, w_b, hidden):
    """(Kf,4H),(Kb,4H) -> (Kf+Kb, 8H) with column blocks
    [i_f i_b f_f f_b o_f o_b g_f g_b]; fwd weights live in rows 0:Kf,
    bwd weights in rows Kf:, zeros elsewhere (block-diagonal structure).
    The i/f/o columns are pre-scaled by 0.5 (sigmoid-via-tanh fold)."""
    kf, kb = w_f.shape[0], w_b.shape[0]
    zf = jnp.zeros((kf, hidden), w_f.dtype)
    zb = jnp.zeros((kb, hidden), w_b.dtype)
    cols = []
    for g, s in zip(_GATE_ORDER, _GATE_SCALE):
        cols.append(jnp.concatenate([s * w_f[:, g * hidden:(g + 1) * hidden], zb], axis=0))
        cols.append(jnp.concatenate([zf, s * w_b[:, g * hidden:(g + 1) * hidden]], axis=0))
    return jnp.concatenate(cols, axis=1)


def _interleave_bias(b_f, b_b, hidden):
    parts = []
    for g, s in zip(_GATE_ORDER, _GATE_SCALE):
        parts.append(s * b_f[g * hidden:(g + 1) * hidden])
        parts.append(s * b_b[g * hidden:(g + 1) * hidden])
    return jnp.concatenate(parts)[None, :]               # (1, 8H)


@functools.partial(jax.jit, static_argnames=("z_size",))
def encoder_forward(x, params, eps, *, z_size):
    """x: (B, T, 5) batch-first (PyTorch convention). Returns (z, mean, logvar)."""
    B, T, F = x.shape
    H = params["whh_f"].shape[0]
    BP = max(8, ((B + 7) // 8) * 8)      # pad batch rows to a full sublane tile

    # Pair x[t] (forward) with x[T-1-t] (backward) along the feature axis and pad
    # B -> BP so every per-step slice inside the kernel is (8,*)-sublane aligned.
    x_t = jnp.transpose(x, (1, 0, 2))                     # (T, B, F)
    x_pair = jnp.concatenate([x_t, x_t[::-1]], axis=-1)   # (T, B, 2F)
    x_pair = jnp.pad(x_pair, ((0, 0), (0, BP - B), (0, 0)))
    x2d = x_pair.reshape(T * BP, 2 * F).astype(jnp.bfloat16)

    # bf16 weights: one MXU pass per dot on v6e/v7x, half the live vregs for w_hh.
    w_in = _interleave_gate_blocks(params["wih_f"], params["wih_b"], H).astype(jnp.bfloat16)
    w_hh = _interleave_gate_blocks(params["whh_f"], params["whh_b"], H).astype(jnp.bfloat16)
    bias = _interleave_bias(params["b_f"], params["b_b"], H)                  # (1, 8H) f32
    wout = params["wout"].astype(jnp.bfloat16)                                # (2H, 2Z)
    bout = params["bout"][None, :]                                            # (1, 2Z) f32
    eps_p = jnp.pad(eps, ((0, BP - B), (0, 0)))

    F2, H2, H8, Z2, Z3 = 2 * F, 2 * H, 8 * H, 2 * z_size, 3 * z_size
    flops = 2 * (T * BP * F2 * H8 + T * BP * H2 * H8 + BP * H2 * Z2)
    transcendentals = T * BP * (H8 + H2) + BP * z_size
    bytes_accessed = (T * BP * F2 * 2 + F2 * H8 * 2 + H2 * H8 * 2 + H8 * 4
                      + H2 * Z2 * 2 + Z2 * 4 + BP * z_size * 4 + BP * Z3 * 4)

    vmem = pl.BlockSpec(memory_space=pltpu.MemorySpace.VMEM)
    out = pl.pallas_call(
        encoder_kernel,
        out_shape=jax.ShapeDtypeStruct((BP, Z3), jnp.float32),
        in_specs=[vmem] * 7,
        out_specs=vmem,
        cost_estimate=pl.CostEstimate(
            flops=flops, transcendentals=transcendentals,
            bytes_accessed=bytes_accessed),
    )(x2d, w_in, w_hh, bias, wout, bout, eps_p)

    z = out[:B, :z_size]
    z_mean = out[:B, z_size:2 * z_size]
    z_logvar = out[:B, 2 * z_size:]
    return z, z_mean, z_logvar


def init_params(key, hidden_size, z_size, input_size=5):
    """Deterministic parameter init mirroring Encoder.reset_parameters shapes."""
    H, Z, F = hidden_size, z_size, input_size
    ks = jax.random.split(key, 8)

    def xavier(k, shape):  # (fan_out, fan_in) -> uniform(-a, a)
        fan_out, fan_in = shape
        a = jnp.sqrt(6.0 / (fan_in + fan_out))
        return jax.random.uniform(k, shape, jnp.float32, -a, a)

    def orthogonal_blocks(k):  # (4H, H) with each (H, H) block orthogonal
        blocks = []
        for kb in jax.random.split(k, 4):
            m = jax.random.normal(kb, (H, H), jnp.float32)
            q, r = jnp.linalg.qr(m)
            q = q * jnp.sign(jnp.diag(r))[None, :]
            blocks.append(q)
        return jnp.concatenate(blocks, axis=0)

    # PyTorch stores weight_ih (4H, F), weight_hh (4H, H); kernel wants transposes.
    wih_f = xavier(ks[0], (4 * H, F)).T            # (F, 4H)
    whh_f = orthogonal_blocks(ks[1]).T             # (H, 4H)
    wih_b = xavier(ks[2], (4 * H, F)).T
    whh_b = orthogonal_blocks(ks[3]).T
    b_f = jnp.zeros((4 * H,), jnp.float32)         # bias_ih + bias_hh, both zero
    b_b = jnp.zeros((4 * H,), jnp.float32)
    wout = (0.001 * jax.random.normal(ks[4], (2 * Z, 2 * H), jnp.float32)).T  # (2H, 2Z)
    bout = jnp.zeros((2 * Z,), jnp.float32)
    return {
        "wih_f": wih_f, "whh_f": whh_f, "b_f": b_f,
        "wih_b": wih_b, "whh_b": whh_b, "b_b": b_b,
        "wout": wout, "bout": bout,
    }


def _reference_forward(x, params, eps, z_size):
    """Pure-JAX reference using the ORIGINAL (non-interleaved, non-scaled)
    weights and plain sigmoid, so it also validates the block-diagonal /
    interleaved / half-scaled weight construction and the tanh-sigmoid trick."""
    B, T, F = x.shape
    H = params["whh_f"].shape[0]

    def step(xt, h, c, wih, whh, b):
        gates = (jnp.dot(xt, wih, preferred_element_type=jnp.float32)
                 + jnp.dot(h, whh, preferred_element_type=jnp.float32) + b)
        i = jax.nn.sigmoid(gates[:, 0 * H:1 * H])
        f = jax.nn.sigmoid(gates[:, 1 * H:2 * H])
        g = jnp.tanh(gates[:, 2 * H:3 * H])
        o = jax.nn.sigmoid(gates[:, 3 * H:4 * H])
        c = f * c + i * g
        h = o * jnp.tanh(c)
        return h, c

    def run_dir(xs, wih, whh, b):
        h = jnp.zeros((B, H), jnp.float32)
        c = jnp.zeros((B, H), jnp.float32)
        for t in range(T):
            h, c = step(xs[:, t, :], h, c, wih, whh, b)
        return h

    h_f = run_dir(x, params["wih_f"], params["whh_f"], params["b_f"])
    h_b = run_dir(x[:, ::-1, :], params["wih_b"], params["whh_b"], params["b_b"])
    h_cat = jnp.concatenate([h_f, h_b], axis=-1)
    out = jnp.dot(h_cat, params["wout"], preferred_element_type=jnp.float32) + params["bout"]
    mean, logvar = out[:, :z_size], out[:, z_size:]
    z = mean + jnp.exp(0.5 * logvar) * eps
    return z, mean, logvar


if __name__ == "__main__":
    B, T, F = 2, 8, 5
    HIDDEN, Z = 32, 16

    key = jax.random.PRNGKey(0)
    k_x, k_p, k_eps = jax.random.split(key, 3)

    x = jax.random.normal(k_x, (B, T, F), jnp.float32)
    params = init_params(k_p, HIDDEN, Z, F)
    eps = jax.random.normal(k_eps, (B, Z), jnp.float32)

    z, z_mean, z_logvar = encoder_forward(x, params, eps, z_size=Z)
    jax.block_until_ready((z, z_mean, z_logvar))

    z_r, m_r, lv_r = _reference_forward(x, params, eps, Z)
    assert jnp.allclose(z, z_r, atol=1e-3), "z mismatch"
    assert jnp.allclose(z_mean, m_r, atol=1e-3), "mean mismatch"
    assert jnp.allclose(z_logvar, lv_r, atol=1e-3), "logvar mismatch"

    print("KERNEL_OK")
</pallas_src>

<mosaic_0001>
module attributes {stable_mosaic.version = 11 : i64} {
  func.func @encoder_kernel(%arg0: memref<64x10xbf16, #tpu.memory_space<vmem>>, %arg1: memref<10x256xbf16, #tpu.memory_space<vmem>>, %arg2: memref<64x256xbf16, #tpu.memory_space<vmem>>, %arg3: memref<1x256xf32, #tpu.memory_space<vmem>>, %arg4: memref<64x32xbf16, #tpu.memory_space<vmem>>, %arg5: memref<1x32xf32, #tpu.memory_space<vmem>>, %arg6: memref<8x16xf32, #tpu.memory_space<vmem>>, %arg7: memref<8x48xf32, #tpu.memory_space<vmem>>) attributes {dimension_semantics = [], scalar_prefetch = 0 : i64, scratch_operands = 0 : i64, tpu.core_type = #tpu.core_type<tc>} {
    %c0 = arith.constant 0 : index
    %c0_0 = arith.constant 0 : index
    %0 = vector.load %arg2[%c0, %c0_0] : memref<64x256xbf16, #tpu.memory_space<vmem>>, vector<64x256xbf16>
    %c0_1 = arith.constant 0 : index
    %c0_2 = arith.constant 0 : index
    %1 = vector.load %arg0[%c0_1, %c0_2] : memref<64x10xbf16, #tpu.memory_space<vmem>>, vector<64x10xbf16>
    %c0_3 = arith.constant 0 : index
    %c0_4 = arith.constant 0 : index
    %2 = vector.load %arg1[%c0_3, %c0_4] : memref<10x256xbf16, #tpu.memory_space<vmem>>, vector<10x256xbf16>
    %cst = arith.constant dense<0.000000e+00> : vector<64x256xf32>
    %3 = tpu.matmul %1, %2, %cst {dimension_numbers = #tpu.dot_dimension_numbers<[1], [0], [0], [1], [0, 0, 1, 1], [], []>} : vector<64x10xbf16>, vector<10x256xbf16>, vector<64x256xf32> -> vector<64x256xf32>
    %c0_5 = arith.constant 0 : index
    %c0_6 = arith.constant 0 : index
    %4 = vector.load %arg3[%c0_5, %c0_6] : memref<1x256xf32, #tpu.memory_space<vmem>>, vector<1x256xf32>
    %5 = vector.broadcast %4 : vector<1x256xf32> to vector<64x256xf32>
    %6 = arith.addf %3, %5 : vector<64x256xf32>
    %cst_7 = arith.constant 0.000000e+00 : f32
    %7 = vector.broadcast %cst_7 : f32 to vector<8x64xf32>
    %cst_8 = arith.constant 0.000000e+00 : f32
    %8 = vector.broadcast %cst_8 : f32 to vector<8x64xf32>
    %9 = vector.extract_strided_slice %6 {offsets = [0, 0], sizes = [8, 256], strides = [1, 1]} : vector<64x256xf32> to vector<8x256xf32>
    %10 = arith.truncf %7 : vector<8x64xf32> to vector<8x64xbf16>
    %cst_9 = arith.constant dense<0.000000e+00> : vector<8x256xf32>
    %11 = tpu.matmul %10, %0, %cst_9 {dimension_numbers = #tpu.dot_dimension_numbers<[1], [0], [0], [1], [0, 0, 1, 1], [], []>} : vector<8x64xbf16>, vector<64x256xbf16>, vector<8x256xf32> -> vector<8x256xf32>
    %12 = arith.addf %9, %11 : vector<8x256xf32>
    %13 = math.tanh %12 : vector<8x256xf32>
    %14 = vector.extract_strided_slice %13 {offsets = [0, 0], sizes = [8, 192], strides = [1, 1]} : vector<8x256xf32> to vector<8x192xf32>
    %cst_10 = arith.constant 1.000000e+00 : f32
    %15 = vector.broadcast %cst_10 : f32 to vector<8x192xf32>
    %16 = arith.addf %14, %15 : vector<8x192xf32>
    %cst_11 = arith.constant 5.000000e-01 : f32
    %17 = vector.broadcast %cst_11 : f32 to vector<8x192xf32>
    %18 = arith.mulf %17, %16 : vector<8x192xf32>
    %19 = vector.extract_strided_slice %18 {offsets = [0, 0], sizes = [8, 64], strides = [1, 1]} : vector<8x192xf32> to vector<8x64xf32>
    %20 = vector.extract_strided_slice %18 {offsets = [0, 64], sizes = [8, 64], strides = [1, 1]} : vector<8x192xf32> to vector<8x64xf32>
    %21 = vector.extract_strided_slice %18 {offsets = [0, 128], sizes = [8, 64], strides = [1, 1]} : vector<8x192xf32> to vector<8x64xf32>
    %22 = vector.extract_strided_slice %13 {offsets = [0, 192], sizes = [8, 64], strides = [1, 1]} : vector<8x256xf32> to vector<8x64xf32>
    %23 = arith.mulf %20, %8 : vector<8x64xf32>
    %24 = arith.mulf %19, %22 : vector<8x64xf32>
    %25 = arith.addf %23, %24 : vector<8x64xf32>
    %26 = math.tanh %25 : vector<8x64xf32>
    %27 = arith.mulf %21, %26 : vector<8x64xf32>
    %28 = vector.extract_strided_slice %6 {offsets = [8, 0], sizes = [8, 256], strides = [1, 1]} : vector<64x256xf32> to vector<8x256xf32>
    %29 = arith.truncf %27 : vector<8x64xf32> to vector<8x64xbf16>
    %cst_12 = arith.constant dense<0.000000e+00> : vector<8x256xf32>
    %30 = tpu.matmul %29, %0, %cst_12 {dimension_numbers = #tpu.dot_dimension_numbers<[1], [0], [0], [1], [0, 0, 1, 1], [], []>} : vector<8x64xbf16>, vector<64x256xbf16>, vector<8x256xf32> -> vector<8x256xf32>
    %31 = arith.addf %28, %30 : vector<8x256xf32>
    %32 = math.tanh %31 : vector<8x256xf32>
    %33 = vector.extract_strided_slice %32 {offsets = [0, 0], sizes = [8, 192], strides = [1, 1]} : vector<8x256xf32> to vector<8x192xf32>
    %cst_13 = arith.constant 1.000000e+00 : f32
    %34 = vector.broadcast %cst_13 : f32 to vector<8x192xf32>
    %35 = arith.addf %33, %34 : vector<8x192xf32>
    %cst_14 = arith.constant 5.000000e-01 : f32
    %36 = vector.broadcast %cst_14 : f32 to vector<8x192xf32>
    %37 = arith.mulf %36, %35 : vector<8x192xf32>
    %38 = vector.extract_strided_slice %37 {offsets = [0, 0], sizes = [8, 64], strides = [1, 1]} : vector<8x192xf32> to vector<8x64xf32>
    %39 = vector.extract_strided_slice %37 {offsets = [0, 64], sizes = [8, 64], strides = [1, 1]} : vector<8x192xf32> to vector<8x64xf32>
    %40 = vector.extract_strided_slice %37 {offsets = [0, 128], sizes = [8, 64], strides = [1, 1]} : vector<8x192xf32> to vector<8x64xf32>
    %41 = vector.extract_strided_slice %32 {offsets = [0, 192], sizes = [8, 64], strides = [1, 1]} : vector<8x256xf32> to vector<8x64xf32>
    %42 = arith.mulf %39, %25 : vector<8x64xf32>
    %43 = arith.mulf %38, %41 : vector<8x64xf32>
    %44 = arith.addf %42, %43 : vector<8x64xf32>
    %45 = math.tanh %44 : vector<8x64xf32>
    %46 = arith.mulf %40, %45 : vector<8x64xf32>
    %47 = vector.extract_strided_slice %6 {offsets = [16, 0], sizes = [8, 256], strides = [1, 1]} : vector<64x256xf32> to vector<8x256xf32>
    %48 = arith.truncf %46 : vector<8x64xf32> to vector<8x64xbf16>
    %cst_15 = arith.constant dense<0.000000e+00> : vector<8x256xf32>
    %49 = tpu.matmul %48, %0, %cst_15 {dimension_numbers = #tpu.dot_dimension_numbers<[1], [0], [0], [1], [0, 0, 1, 1], [], []>} : vector<8x64xbf16>, vector<64x256xbf16>, vector<8x256xf32> -> vector<8x256xf32>
    %50 = arith.addf %47, %49 : vector<8x256xf32>
    %51 = math.tanh %50 : vector<8x256xf32>
    %52 = vector.extract_strided_slice %51 {offsets = [0, 0], sizes = [8, 192], strides = [1, 1]} : vector<8x256xf32> to vector<8x192xf32>
    %cst_16 = arith.constant 1.000000e+00 : f32
    %53 = vector.broadcast %cst_16 : f32 to vector<8x192xf32>
    %54 = arith.addf %52, %53 : vector<8x192xf32>
    %cst_17 = arith.constant 5.000000e-01 : f32
    %55 = vector.broadcast %cst_17 : f32 to vector<8x192xf32>
    %56 = arith.mulf %55, %54 : vector<8x192xf32>
    %57 = vector.extract_strided_slice %56 {offsets = [0, 0], sizes = [8, 64], strides = [1, 1]} : vector<8x192xf32> to vector<8x64xf32>
    %58 = vector.extract_strided_slice %56 {offsets = [0, 64], sizes = [8, 64], strides = [1, 1]} : vector<8x192xf32> to vector<8x64xf32>
    %59 = vector.extract_strided_slice %56 {offsets = [0, 128], sizes = [8, 64], strides = [1, 1]} : vector<8x192xf32> to vector<8x64xf32>
    %60 = vector.extract_strided_slice %51 {offsets = [0, 192], sizes = [8, 64], strides = [1, 1]} : vector<8x256xf32> to vector<8x64xf32>
    %61 = arith.mulf %58, %44 : vector<8x64xf32>
    %62 = arith.mulf %57, %60 : vector<8x64xf32>
    %63 = arith.addf %61, %62 : vector<8x64xf32>
    %64 = math.tanh %63 : vector<8x64xf32>
    %65 = arith.mulf %59, %64 : vector<8x64xf32>
    %66 = vector.extract_strided_slice %6 {offsets = [24, 0], sizes = [8, 256], strides = [1, 1]} : vector<64x256xf32> to vector<8x256xf32>
    %67 = arith.truncf %65 : vector<8x64xf32> to vector<8x64xbf16>
    %cst_18 = arith.constant dense<0.000000e+00> : vector<8x256xf32>
    %68 = tpu.matmul %67, %0, %cst_18 {dimension_numbers = #tpu.dot_dimension_numbers<[1], [0], [0], [1], [0, 0, 1, 1], [], []>} : vector<8x64xbf16>, vector<64x256xbf16>, vector<8x256xf32> -> vector<8x256xf32>
    %69 = arith.addf %66, %68 : vector<8x256xf32>
    %70 = math.tanh %69 : vector<8x256xf32>
    %71 = vector.extract_strided_slice %70 {offsets = [0, 0], sizes = [8, 192], strides = [1, 1]} : vector<8x256xf32> to vector<8x192xf32>
    %cst_19 = arith.constant 1.000000e+00 : f32
    %72 = vector.broadcast %cst_19 : f32 to vector<8x192xf32>
    %73 = arith.addf %71, %72 : vector<8x192xf32>
    %cst_20 = arith.constant 5.000000e-01 : f32
    %74 = vector.broadcast %cst_20 : f32 to vector<8x192xf32>
    %75 = arith.mulf %74, %73 : vector<8x192xf32>
    %76 = vector.extract_strided_slice %75 {offsets = [0, 0], sizes = [8, 64], strides = [1, 1]} : vector<8x192xf32> to vector<8x64xf32>
    %77 = vector.extract_strided_slice %75 {offsets = [0, 64], sizes = [8, 64], strides = [1, 1]} : vector<8x192xf32> to vector<8x64xf32>
    %78 = vector.extract_strided_slice %75 {offsets = [0, 128], sizes = [8, 64], strides = [1, 1]} : vector<8x192xf32> to vector<8x64xf32>
    %79 = vector.extract_strided_slice %70 {offsets = [0, 192], sizes = [8, 64], strides = [1, 1]} : vector<8x256xf32> to vector<8x64xf32>
    %80 = arith.mulf %77, %63 : vector<8x64xf32>
    %81 = arith.mulf %76, %79 : vector<8x64xf32>
    %82 = arith.addf %80, %81 : vector<8x64xf32>
    %83 = math.tanh %82 : vector<8x64xf32>
    %84 = arith.mulf %78, %83 : vector<8x64xf32>
    %85 = vector.extract_strided_slice %6 {offsets = [32, 0], sizes = [8, 256], strides = [1, 1]} : vector<64x256xf32> to vector<8x256xf32>
    %86 = arith.truncf %84 : vector<8x64xf32> to vector<8x64xbf16>
    %cst_21 = arith.constant dense<0.000000e+00> : vector<8x256xf32>
    %87 = tpu.matmul %86, %0, %cst_21 {dimension_numbers = #tpu.dot_dimension_numbers<[1], [0], [0], [1], [0, 0, 1, 1], [], []>} : vector<8x64xbf16>, vector<64x256xbf16>, vector<8x256xf32> -> vector<8x256xf32>
    %88 = arith.addf %85, %87 : vector<8x256xf32>
    %89 = math.tanh %88 : vector<8x256xf32>
    %90 = vector.extract_strided_slice %89 {offsets = [0, 0], sizes = [8, 192], strides = [1, 1]} : vector<8x256xf32> to vector<8x192xf32>
    %cst_22 = arith.constant 1.000000e+00 : f32
    %91 = vector.broadcast %cst_22 : f32 to vector<8x192xf32>
    %92 = arith.addf %90, %91 : vector<8x192xf32>
    %cst_23 = arith.constant 5.000000e-01 : f32
    %93 = vector.broadcast %cst_23 : f32 to vector<8x192xf32>
    %94 = arith.mulf %93, %92 : vector<8x192xf32>
    %95 = vector.extract_strided_slice %94 {offsets = [0, 0], sizes = [8, 64], strides = [1, 1]} : vector<8x192xf32> to vector<8x64xf32>
    %96 = vector.extract_strided_slice %94 {offsets = [0, 64], sizes = [8, 64], strides = [1, 1]} : vector<8x192xf32> to vector<8x64xf32>
    %97 = vector.extract_strided_slice %94 {offsets = [0, 128], sizes = [8, 64], strides = [1, 1]} : vector<8x192xf32> to vector<8x64xf32>
    %98 = vector.extract_strided_slice %89 {offsets = [0, 192], sizes = [8, 64], strides = [1, 1]} : vector<8x256xf32> to vector<8x64xf32>
    %99 = arith.mulf %96, %82 : vector<8x64xf32>
    %100 = arith.mulf %95, %98 : vector<8x64xf32>
    %101 = arith.addf %99, %100 : vector<8x64xf32>
    %102 = math.tanh %101 : vector<8x64xf32>
    %103 = arith.mulf %97, %102 : vector<8x64xf32>
    %104 = vector.extract_strided_slice %6 {offsets = [40, 0], sizes = [8, 256], strides = [1, 1]} : vector<64x256xf32> to vector<8x256xf32>
    %105 = arith.truncf %103 : vector<8x64xf32> to vector<8x64xbf16>
    %cst_24 = arith.constant dense<0.000000e+00> : vector<8x256xf32>
    %106 = tpu.matmul %105, %0, %cst_24 {dimension_numbers = #tpu.dot_dimension_numbers<[1], [0], [0], [1], [0, 0, 1, 1], [], []>} : vector<8x64xbf16>, vector<64x256xbf16>, vector<8x256xf32> -> vector<8x256xf32>
    %107 = arith.addf %104, %106 : vector<8x256xf32>
    %108 = math.tanh %107 : vector<8x256xf32>
    %109 = vector.extract_strided_slice %108 {offsets = [0, 0], sizes = [8, 192], strides = [1, 1]} : vector<8x256xf32> to vector<8x192xf32>
    %cst_25 = arith.constant 1.000000e+00 : f32
    %110 = vector.broadcast %cst_25 : f32 to vector<8x192xf32>
    %111 = arith.addf %109, %110 : vector<8x192xf32>
    %cst_26 = arith.constant 5.000000e-01 : f32
    %112 = vector.broadcast %cst_26 : f32 to vector<8x192xf32>
    %113 = arith.mulf %112, %111 : vector<8x192xf32>
    %114 = vector.extract_strided_slice %113 {offsets = [0, 0], sizes = [8, 64], strides = [1, 1]} : vector<8x192xf32> to vector<8x64xf32>
    %115 = vector.extract_strided_slice %113 {offsets = [0, 64], sizes = [8, 64], strides = [1, 1]} : vector<8x192xf32> to vector<8x64xf32>
    %116 = vector.extract_strided_slice %113 {offsets = [0, 128], sizes = [8, 64], strides = [1, 1]} : vector<8x192xf32> to vector<8x64xf32>
    %117 = vector.extract_strided_slice %108 {offsets = [0, 192], sizes = [8, 64], strides = [1, 1]} : vector<8x256xf32> to vector<8x64xf32>
    %118 = arith.mulf %115, %101 : vector<8x64xf32>
    %119 = arith.mulf %114, %117 : vector<8x64xf32>
    %120 = arith.addf %118, %119 : vector<8x64xf32>
    %121 = math.tanh %120 : vector<8x64xf32>
    %122 = arith.mulf %116, %121 : vector<8x64xf32>
    %123 = vector.extract_strided_slice %6 {offsets = [48, 0], sizes = [8, 256], strides = [1, 1]} : vector<64x256xf32> to vector<8x256xf32>
    %124 = arith.truncf %122 : vector<8x64xf32> to vector<8x64xbf16>
    %cst_27 = arith.constant dense<0.000000e+00> : vector<8x256xf32>
    %125 = tpu.matmul %124, %0, %cst_27 {dimension_numbers = #tpu.dot_dimension_numbers<[1], [0], [0], [1], [0, 0, 1, 1], [], []>} : vector<8x64xbf16>, vector<64x256xbf16>, vector<8x256xf32> -> vector<8x256xf32>
    %126 = arith.addf %123, %125 : vector<8x256xf32>
    %127 = math.tanh %126 : vector<8x256xf32>
    %128 = vector.extract_strided_slice %127 {offsets = [0, 0], sizes = [8, 192], strides = [1, 1]} : vector<8x256xf32> to vector<8x192xf32>
    %cst_28 = arith.constant 1.000000e+00 : f32
    %129 = vector.broadcast %cst_28 : f32 to vector<8x192xf32>
    %130 = arith.addf %128, %129 : vector<8x192xf32>
    %cst_29 = arith.constant 5.000000e-01 : f32
    %131 = vector.broadcast %cst_29 : f32 to vector<8x192xf32>
    %132 = arith.mulf %131, %130 : vector<8x192xf32>
    %133 = vector.extract_strided_slice %132 {offsets = [0, 0], sizes = [8, 64], strides = [1, 1]} : vector<8x192xf32> to vector<8x64xf32>
    %134 = vector.extract_strided_slice %132 {offsets = [0, 64], sizes = [8, 64], strides = [1, 1]} : vector<8x192xf32> to vector<8x64xf32>
    %135 = vector.extract_strided_slice %132 {offsets = [0, 128], sizes = [8, 64], strides = [1, 1]} : vector<8x192xf32> to vector<8x64xf32>
    %136 = vector.extract_strided_slice %127 {offsets = [0, 192], sizes = [8, 64], strides = [1, 1]} : vector<8x256xf32> to vector<8x64xf32>
    %137 = arith.mulf %134, %120 : vector<8x64xf32>
    %138 = arith.mulf %133, %136 : vector<8x64xf32>
    %139 = arith.addf %137, %138 : vector<8x64xf32>
    %140 = math.tanh %139 : vector<8x64xf32>
    %141 = arith.mulf %135, %140 : vector<8x64xf32>
    %142 = vector.extract_strided_slice %6 {offsets = [56, 0], sizes = [8, 256], strides = [1, 1]} : vector<64x256xf32> to vector<8x256xf32>
    %143 = arith.truncf %141 : vector<8x64xf32> to vector<8x64xbf16>
    %cst_30 = arith.constant dense<0.000000e+00> : vector<8x256xf32>
    %144 = tpu.matmul %143, %0, %cst_30 {dimension_numbers = #tpu.dot_dimension_numbers<[1], [0], [0], [1], [0, 0, 1, 1], [], []>} : vector<8x64xbf16>, vector<64x256xbf16>, vector<8x256xf32> -> vector<8x256xf32>
    %145 = arith.addf %142, %144 : vector<8x256xf32>
    %146 = math.tanh %145 : vector<8x256xf32>
    %147 = vector.extract_strided_slice %146 {offsets = [0, 0], sizes = [8, 192], strides = [1, 1]} : vector<8x256xf32> to vector<8x192xf32>
    %cst_31 = arith.constant 1.000000e+00 : f32
    %148 = vector.broadcast %cst_31 : f32 to vector<8x192xf32>
    %149 = arith.addf %147, %148 : vector<8x192xf32>
    %cst_32 = arith.constant 5.000000e-01 : f32
    %150 = vector.broadcast %cst_32 : f32 to vector<8x192xf32>
    %151 = arith.mulf %150, %149 : vector<8x192xf32>
    %152 = vector.extract_strided_slice %151 {offsets = [0, 0], sizes = [8, 64], strides = [1, 1]} : vector<8x192xf32> to vector<8x64xf32>
    %153 = vector.extract_strided_slice %151 {offsets = [0, 64], sizes = [8, 64], strides = [1, 1]} : vector<8x192xf32> to vector<8x64xf32>
    %154 = vector.extract_strided_slice %151 {offsets = [0, 128], sizes = [8, 64], strides = [1, 1]} : vector<8x192xf32> to vector<8x64xf32>
    %155 = vector.extract_strided_slice %146 {offsets = [0, 192], sizes = [8, 64], strides = [1, 1]} : vector<8x256xf32> to vector<8x64xf32>
    %156 = arith.mulf %153, %139 : vector<8x64xf32>
    %157 = arith.mulf %152, %155 : vector<8x64xf32>
    %158 = arith.addf %156, %157 : vector<8x64xf32>
    %159 = math.tanh %158 : vector<8x64xf32>
    %160 = arith.mulf %154, %159 : vector<8x64xf32>
    %161 = arith.truncf %160 : vector<8x64xf32> to vector<8x64xbf16>
    %c0_33 = arith.constant 0 : index
    %c0_34 = arith.constant 0 : index
    %162 = vector.load %arg4[%c0_33, %c0_34] : memref<64x32xbf16, #tpu.memory_space<vmem>>, vector<64x32xbf16>
    %cst_35 = arith.constant dense<0.000000e+00> : vector<8x32xf32>
    %163 = tpu.matmul %161, %162, %cst_35 {dimension_numbers = #tpu.dot_dimension_numbers<[1], [0], [0], [1], [0, 0, 1, 1], [], []>} : vector<8x64xbf16>, vector<64x32xbf16>, vector<8x32xf32> -> vector<8x32xf32>
    %c0_36 = arith.constant 0 : index
    %c0_37 = arith.constant 0 : index
    %164 = vector.load %arg5[%c0_36, %c0_37] : memref<1x32xf32, #tpu.memory_space<vmem>>, vector<1x32xf32>
    %165 = vector.broadcast %164 : vector<1x32xf32> to vector<8x32xf32>
    %166 = arith.addf %163, %165 : vector<8x32xf32>
    %167 = vector.extract_strided_slice %166 {offsets = [0, 0], sizes = [8, 16], strides = [1, 1]} : vector<8x32xf32> to vector<8x16xf32>
    %168 = vector.extract_strided_slice %166 {offsets = [0, 16], sizes = [8, 16], strides = [1, 1]} : vector<8x32xf32> to vector<8x16xf32>
    %cst_38 = arith.constant 5.000000e-01 : f32
    %169 = vector.broadcast %cst_38 : f32 to vector<8x16xf32>
    %170 = arith.mulf %169, %168 : vector<8x16xf32>
    %171 = math.exp %170 : vector<8x16xf32>
    %c0_39 = arith.constant 0 : index
    %c0_40 = arith.constant 0 : index
    %172 = vector.load %arg6[%c0_39, %c0_40] : memref<8x16xf32, #tpu.memory_space<vmem>>, vector<8x16xf32>
    %173 = arith.mulf %171, %172 : vector<8x16xf32>
    %174 = arith.addf %167, %173 : vector<8x16xf32>
    %175 = tpu.concatenate %174, %166 in 1 : vector<8x16xf32>, vector<8x32xf32> -> vector<8x48xf32>
    %c0_41 = arith.constant 0 : index
    %c0_42 = arith.constant 0 : index
    %176 = vector.load %arg7[%c0_41, %c0_42] : memref<8x48xf32, #tpu.memory_space<vmem>>, vector<8x48xf32>
    tpu.vector_store %arg7[%c0_41, %c0_42], %175 {strides = array<i32>} : memref<8x48xf32, #tpu.memory_space<vmem>>, vector<8x48xf32>,
    return
  }
}

</mosaic_0001>

<llo_original>
// kernel: encoder_forward.1
$region0: #{encoder_forward.1}
  #allocation0 [shape = 'u32[]', space=smem, size = 0x4, offset = 0x4, fixed_abs, tag = 'smem constant byte address 0x4 - core index']
  #allocation1 [shape = 'u32[144,128]{1,0:T(1,128)}', space=vmem, size = 0x12000, scoped, tag = 'internal scratch']
  %s0 = inlined_call_operand.vmem [shape: bf16[64,10], index: 0, kind: input, shape index: {}]
  %s1 = inlined_call_operand.vmem [shape: bf16[10,256], index: 1, kind: input, shape index: {}]
  %s2 = inlined_call_operand.vmem [shape: bf16[64,256], index: 2, kind: input, shape index: {}]
  %s3 = inlined_call_operand.vmem [shape: f32[1,256], index: 3, kind: input, shape index: {}]
  %s4 = inlined_call_operand.vmem [shape: bf16[64,32], index: 4, kind: input, shape index: {}]
  %s5 = inlined_call_operand.vmem [shape: f32[1,32], index: 5, kind: input, shape index: {}]
  %s6 = inlined_call_operand.vmem [shape: f32[8,16], index: 6, kind: input, shape index: {}]
  %s7 = inlined_call_operand.vmem [shape: f32[8,48], index: 7, kind: output, shape index: {}]
  %s8 = sld [smem:[#allocation0]]
  $region38: #{encoder_forward.1} parent=0
    _
  %s10 = ssub.s32 1, %s8
  %s11 = scalar_select 0, %s10, %s8
  // Predicated region
  $region2: #{encoder_forward.1} parent=0 // pred_check
    _
  $region3: #{encoder_forward.1} parent=0 // pred_check_branch
    %13 = sbr.rel (0) target = $region5
  $region4: #{encoder_forward.1} parent=0 // pred_region
    _
  $region5: #{encoder_forward.1} parent=0 // pred_fallthru
    _
  // Predicated region
  $region6: #{encoder_forward.1} parent=0 // pred_check
    _
  $region7: #{encoder_forward.1} parent=0 // pred_check_branch
    %15 = sbr.rel (0) target = $region9
  $region8: #{encoder_forward.1} parent=0 // pred_region
    _
  $region9: #{encoder_forward.1} parent=0 // pred_fallthru
    _
  // Predicated region
  $region10: #{encoder_forward.1} parent=0 // pred_check
    _
  $region11: #{encoder_forward.1} parent=0 // pred_check_branch
    %17 = sbr.rel (0) target = $region13
  $region12: #{encoder_forward.1} parent=0 // pred_region
    _
  $region13: #{encoder_forward.1} parent=0 // pred_fallthru
    _
  // Predicated region
  $region14: #{encoder_forward.1} parent=0 // pred_check
    _
  $region15: #{encoder_forward.1} parent=0 // pred_check_branch
    %19 = sbr.rel (0) target = $region17
  $region16: #{encoder_forward.1} parent=0 // pred_region
    _
  $region17: #{encoder_forward.1} parent=0 // pred_fallthru
    _
  // Predicated region
  $region18: #{encoder_forward.1} parent=0 // pred_check
    _
  $region19: #{encoder_forward.1} parent=0 // pred_check_branch
    %21 = sbr.rel (0) target = $region21
  $region20: #{encoder_forward.1} parent=0 // pred_region
    _
  $region21: #{encoder_forward.1} parent=0 // pred_fallthru
    _
  // Predicated region
  $region22: #{encoder_forward.1} parent=0 // pred_check
    _
  $region23: #{encoder_forward.1} parent=0 // pred_check_branch
    %23 = sbr.rel (0) target = $region25
  $region24: #{encoder_forward.1} parent=0 // pred_region
    _
  $region25: #{encoder_forward.1} parent=0 // pred_fallthru
    _
  // Predicated region
  $region26: #{encoder_forward.1} parent=0 // pred_check
    _
  $region27: #{encoder_forward.1} parent=0 // pred_check_branch
    %25 = sbr.rel (0) target = $region29
  $region28: #{encoder_forward.1} parent=0 // pred_region
    _
  $region29: #{encoder_forward.1} parent=0 // pred_fallthru
    _
  %v27 = vld [vmem:[%s2] sm:$0xff]
  %v28 = vld [vmem:[%s2 + $0x8] sm:$0xff]
  %v29 = vld [vmem:[%s2 + $0x10] sm:$0xff]
  %v30 = vld [vmem:[%s2 + $0x18] sm:$0xff]
  %v31 = vld [vmem:[%s2 + $0x20] sm:$0xff]
  %v32 = vld [vmem:[%s2 + $0x28] sm:$0xff]
  %v33 = vld [vmem:[%s2 + $0x30] sm:$0xff]
  %v34 = vld [vmem:[%s2 + $0x38] sm:$0xff]
  %v35 = vld [vmem:[%s0] sm:$0xf]
  %v36 = vld [vmem:[%s0 + $0x4] sm:$0xf]
  %v37 = vld [vmem:[%s0 + $0x8] sm:$0xf]
  %v38 = vld [vmem:[%s0 + $0xc] sm:$0xf]
  %v39 = vld [vmem:[%s0 + $0x10] sm:$0xf]
  %v40 = vld [vmem:[%s0 + $0x14] sm:$0xf]
  %v41 = vld [vmem:[%s0 + $0x18] sm:$0xf]
  %v42 = vld [vmem:[%s0 + $0x1c] sm:$0xf]
  %v43 = vld [vmem:[%s1] sm:$0xff]
  %v44 = vld [vmem:[%s1 + $0x8] sm:$0x11]
  %v45 = vld [vmem:[%s3] sm:$0x3]
  %v47 = vlaneseq
  %v48 = vshrl.u32 %v47, 7
  %v49 = vsub.s32 0, %v48
  %v50 = vrot.slane %v45, %v49
  %v51 = vlaneseq
  %v52 = vshrl.u32 %v51, 7
  %v53 = vsub.s32 1, %v52
  %v54 = vrot.slane %v45, %v53
  %v65 = vunpack.c.l.b16 %v35
  %v66 = vunpack.c.l.b16 %v36
  %v67 = vunpack.c.l.b16 %v37
  %v68 = vunpack.c.l.b16 %v38
  %v69 = vunpack.c.l.b16 %v39
  %v70 = vunpack.c.l.b16 %v40
  %v71 = vunpack.c.l.b16 %v41
  %v72 = vunpack.c.l.b16 %v42
  %v73 = vpack.c.b16 %v66, %v65
  %v74 = vpack.c.b16 %v68, %v67
  %v75 = vpack.c.b16 %v70, %v69
  %v76 = vpack.c.b16 %v72, %v71
  %v79 = vunpack.c.l.b16 %v43
  %v80 = vunpack.c.h.b16 %v43
  %v81 = vunpack.c.l.b16 %v44
  %v82 = vunpack.c.h.b16 %v44
  %v83 = vpack.c.b16 %v81, %v79
  %v84 = vpack.c.b16 %v82, %v80
  %vm85 = vcmask 80896
  %v87 = vsel %vm85, %v73, 0
  %v90 = vsel %vm85, %v74, 0
  %v93 = vsel %vm85, %v75, 0
  %v96 = vsel %vm85, %v76, 0
  %vm98 = vcmask 1044480
  %v100 = vsel %vm98, %v83, 0
  %v103 = vsel %vm98, %v84, 0
  %105 = vmatprep.subr.bf16.mxu0 0
  %106 = vmatpush1.bf16.msra.mxu0 0
  %107 = vmatprep.subr.bf16.mxu0 0
  %108 = vmatpush1.bf16.msra.mxu0 0
  %109 = vmatprep.subr.bf16.mxu0 0
  %110 = vmatpush1.bf16.msra.mxu0 0
  %111 = vmatprep.subr.bf16.mxu0 0
  %112 = vmatpush1.bf16.msra.mxu0 0
  %113 = vmatprep.subr.bf16.mxu0 0
  %114 = vmatpush1.bf16.msra.mxu0 0
  %115 = vmatprep.subr.bf16.mxu0 0
  %116 = vmatpush1.bf16.msra.mxu0 0
  %117 = vmatprep.subr.bf16.mxu0 0
  %118 = vmatpush1.bf16.msra.mxu0 0
  %119 = vmatprep.subr.bf16.mxu0 %v103
  %120 = vmatpush1.bf16.msra.mxu0 %v100
  %121 = vmatprep.subr.bf16.mxu0 0
  %122 = vmatpush2.bf16.msra.mxu0 0
  %123 = vmatprep.subr.bf16.mxu0 0
  %124 = vmatpush2.bf16.msra.mxu0 0
  %125 = vmatprep.subr.bf16.mxu0 0
  %126 = vmatpush2.bf16.msra.mxu0 0
  %127 = vmatprep.subr.bf16.mxu0 0
  %128 = vmatpush2.bf16.msra.mxu0 0
  %129 = vmatprep.subr.bf16.mxu0 0
  %130 = vmatpush2.bf16.msra.mxu0 0
  %131 = vmatprep.subr.bf16.mxu0 0
  %132 = vmatpush2.bf16.msra.mxu0 0
  %133 = vmatprep.subr.bf16.mxu0 0
  %134 = vmatpush2.bf16.msra.mxu0 0
  %135 = vmatprep.subr.bf16.mxu0 0
  %136 = vmatpush2.bf16.msra.mxu0 0
  %137 = vmatprep.mubr.bf16.mxu0 0
  %138 = vmatmul.mubr.bf16.gmra.mxu0 %v87
  %v139 = vpop.f32.mrf.mxu0
  %v140 = vadd.f32 %v50, %v139
  %v141 = vpop.f32.mrf.mxu0
  %v142 = vadd.f32 %v54, %v141
  %v143 = vpop.f32.mrf.mxu0
  %v144 = vadd.f32 %v50, %v143
  %v145 = vpop.f32.mrf.mxu0
  %v146 = vadd.f32 %v54, %v145
  %147 = vmatprep.mubr.bf16.mxu0 0
  %148 = vmatmul.mubr.bf16.gmra.mxu0 %v90
  %v149 = vpop.f32.mrf.mxu0
  %v150 = vadd.f32 %v50, %v149
  %v151 = vpop.f32.mrf.mxu0
  %v152 = vadd.f32 %v54, %v151
  %v153 = vpop.f32.mrf.mxu0
  %v154 = vadd.f32 %v50, %v153
  %v155 = vpop.f32.mrf.mxu0
  %v156 = vadd.f32 %v54, %v155
  %157 = vmatprep.mubr.bf16.mxu0 0
  %158 = vmatmul.mubr.bf16.gmra.mxu0 %v93
  %v159 = vpop.f32.mrf.mxu0
  %v160 = vadd.f32 %v50, %v159
  %v161 = vpop.f32.mrf.mxu0
  %v162 = vadd.f32 %v54, %v161
  %v163 = vpop.f32.mrf.mxu0
  %v164 = vadd.f32 %v50, %v163
  %v165 = vpop.f32.mrf.mxu0
  %v166 = vadd.f32 %v54, %v165
  %167 = vmatprep.mubr.bf16.mxu0 0
  %168 = vmatmul.mubr.bf16.gmra.mxu0 %v96
  %v169 = vpop.f32.mrf.mxu0
  %v170 = vadd.f32 %v50, %v169
  %v171 = vpop.f32.mrf.mxu0
  %v172 = vadd.f32 %v54, %v171
  %v173 = vpop.f32.mrf.mxu0
  %v174 = vadd.f32 %v50, %v173
  %v175 = vpop.f32.mrf.mxu0
  %v176 = vadd.f32 %v54, %v175
  %177 = vdwg.mxu0
  %v186 = vunpack.c.l.b16 %v27
  %v187 = vunpack.c.h.b16 %v27
  %v188 = vunpack.c.l.b16 %v28
  %v189 = vunpack.c.h.b16 %v28
  %v190 = vunpack.c.l.b16 %v29
  %v191 = vunpack.c.h.b16 %v29
  %v192 = vunpack.c.l.b16 %v30
  %v193 = vunpack.c.h.b16 %v30
  %v194 = vunpack.c.l.b16 %v31
  %v195 = vunpack.c.h.b16 %v31
  %v196 = vunpack.c.l.b16 %v32
  %v197 = vunpack.c.h.b16 %v32
  %v198 = vunpack.c.l.b16 %v33
  %v199 = vunpack.c.h.b16 %v33
  %v200 = vunpack.c.l.b16 %v34
  %v201 = vunpack.c.h.b16 %v34
  %v202 = vpack.c.b16 %v188, %v186
  %v203 = vpack.c.b16 %v189, %v187
  %v204 = vpack.c.b16 %v192, %v190
  %v205 = vpack.c.b16 %v193, %v191
  %v206 = vpack.c.b16 %v196, %v194
  %v207 = vpack.c.b16 %v197, %v195
  %v208 = vpack.c.b16 %v200, %v198
  %v209 = vpack.c.b16 %v201, %v199
  %vm218 = vcmask 523264
  %v220 = vsel %vm218, 0, 0
  %222 = vmatprep.subr.bf16.mxu0 0
  %223 = vmatpush1.bf16.msra.mxu0 0
  %224 = vmatprep.subr.bf16.mxu0 0
  %225 = vmatpush1.bf16.msra.mxu0 0
  %226 = vmatprep.subr.bf16.mxu0 0
  %227 = vmatpush1.bf16.msra.mxu0 0
  %228 = vmatprep.subr.bf16.mxu0 0
  %229 = vmatpush1.bf16.msra.mxu0 0
  %230 = vmatprep.subr.bf16.mxu0 %v209
  %231 = vmatpush1.bf16.msra.mxu0 %v208
  %232 = vmatprep.subr.bf16.mxu0 %v207
  %233 = vmatpush1.bf16.msra.mxu0 %v206
  %234 = vmatprep.subr.bf16.mxu0 %v205
  %235 = vmatpush1.bf16.msra.mxu0 %v204
  %236 = vmatprep.subr.bf16.mxu0 %v203
  %237 = vmatpush1.bf16.msra.mxu0 %v202
  %238 = vmatprep.subr.bf16.mxu0 0
  %239 = vmatpush2.bf16.msra.mxu0 0
  %240 = vmatprep.subr.bf16.mxu0 0
  %241 = vmatpush2.bf16.msra.mxu0 0
  %242 = vmatprep.subr.bf16.mxu0 0
  %243 = vmatpush2.bf16.msra.mxu0 0
  %244 = vmatprep.subr.bf16.mxu0 0
  %245 = vmatpush2.bf16.msra.mxu0 0
  %246 = vmatprep.subr.bf16.mxu0 0
  %247 = vmatpush2.bf16.msra.mxu0 0
  %248 = vmatprep.subr.bf16.mxu0 0
  %249 = vmatpush2.bf16.msra.mxu0 0
  %250 = vmatprep.subr.bf16.mxu0 0
  %251 = vmatpush2.bf16.msra.mxu0 0
  %252 = vmatprep.subr.bf16.mxu0 0
  %253 = vmatpush2.bf16.msra.mxu0 0
  %254 = vmatprep.mubr.bf16.mxu0 0
  %255 = vmatmul.mubr.bf16.gmra.mxu0 %v220
  %v256 = vpop.f32.mrf.mxu0
  %v257 = vadd.f32 0.0, %v256
  %v258 = vpop.f32.mrf.mxu0
  %v259 = vadd.f32 0.0, %v258
  %v260 = vpop.f32.mrf.mxu0
  %v261 = vpop.f32.mrf.mxu0
  %262 = vdwg.mxu0
  %v263 = vadd.f32 %v140, %v257
  %v264 = vadd.f32 %v142, %v259
  %v265 = vtanh.pop %v263
  %v266 = vtanh.pop %v264
  %v267 = vadd.f32 %v265, 1.0
  %v268 = vadd.f32 %v266, 1.0
  %v269 = vmul.f32 %v267, 0.5
  %v270 = vmul.f32 %v268, 0.5
  %v271 = vmul.f32 %v269, 0.0
  %273 = vrot.lane.b32.xlu0 %v266, 64
  %v274 = vpop.permute.xlu0 %273
  %v276 = vmul.f32 %v269, %v274
  %278 = vrot.lane.b32.xlu0 %v276, 64
  %v279 = vpop.permute.xlu0 %278
  %v281 = vadd.f32 %v271, %v279
  %v282 = vtanh.pop %v281
  %284 = vrot.lane.b32.xlu0 %v282, 64
  %v285 = vpop.permute.xlu0 %284
  %v287 = vmul.f32 %v270, %v285
  %v288 = vpack.c.bf16 %v287, %v287
  %v290 = vsel %vm218, %v288, 0
  %292 = vmatprep.subr.bf16.mxu0 0
  %293 = vmatpush1.bf16.msra.mxu0 0
  %294 = vmatprep.subr.bf16.mxu0 0
  %295 = vmatpush1.bf16.msra.mxu0 0
  %296 = vmatprep.subr.bf16.mxu0 0
  %297 = vmatpush1.bf16.msra.mxu0 0
  %298 = vmatprep.subr.bf16.mxu0 0
  %299 = vmatpush1.bf16.msra.mxu0 0
  %300 = vmatprep.subr.bf16.mxu0 %v209
  %301 = vmatpush1.bf16.msra.mxu0 %v208
  %302 = vmatprep.subr.bf16.mxu0 %v207
  %303 = vmatpush1.bf16.msra.mxu0 %v206
  %304 = vmatprep.subr.bf16.mxu0 %v205
  %305 = vmatpush1.bf16.msra.mxu0 %v204
  %306 = vmatprep.subr.bf16.mxu0 %v203
  %307 = vmatpush1.bf16.msra.mxu0 %v202
  %308 = vmatprep.subr.bf16.mxu0 0
  %309 = vmatpush2.bf16.msra.mxu0 0
  %310 = vmatprep.subr.bf16.mxu0 0
  %311 = vmatpush2.bf16.msra.mxu0 0
  %312 = vmatprep.subr.bf16.mxu0 0
  %313 = vmatpush2.bf16.msra.mxu0 0
  %314 = vmatprep.subr.bf16.mxu0 0
  %315 = vmatpush2.bf16.msra.mxu0 0
  %316 = vmatprep.subr.bf16.mxu0 0
  %317 = vmatpush2.bf16.msra.mxu0 0
  %318 = vmatprep.subr.bf16.mxu0 0
  %319 = vmatpush2.bf16.msra.mxu0 0
  %320 = vmatprep.subr.bf16.mxu0 0
  %321 = vmatpush2.bf16.msra.mxu0 0
  %322 = vmatprep.subr.bf16.mxu0 0
  %323 = vmatpush2.bf16.msra.mxu0 0
  %324 = vmatprep.mubr.bf16.mxu0 0
  %325 = vmatmul.mubr.bf16.gmra.mxu0 %v290
  %v326 = vpop.f32.mrf.mxu0
  %v327 = vadd.f32 0.0, %v326
  %v328 = vpop.f32.mrf.mxu0
  %v329 = vadd.f32 0.0, %v328
  %v330 = vpop.f32.mrf.mxu0
  %v331 = vpop.f32.mrf.mxu0
  %332 = vdwg.mxu0
  %v333 = vadd.f32 %v144, %v327
  %v334 = vadd.f32 %v146, %v329
  %v335 = vtanh.pop %v333
  %v336 = vtanh.pop %v334
  %v337 = vadd.f32 %v335, 1.0
  %v338 = vadd.f32 %v336, 1.0
  %v339 = vmul.f32 %v337, 0.5
  %v340 = vmul.f32 %v338, 0.5
  %v341 = vmul.f32 %v339, %v281
  %343 = vrot.lane.b32.xlu0 %v336, 64
  %v344 = vpop.permute.xlu0 %343
  %v346 = vmul.f32 %v339, %v344
  %348 = vrot.lane.b32.xlu0 %v346, 64
  %v349 = vpop.permute.xlu0 %348
  %v351 = vadd.f32 %v341, %v349
  %v352 = vtanh.pop %v351
  %354 = vrot.lane.b32.xlu0 %v352, 64
  %v355 = vpop.permute.xlu0 %354
  %v357 = vmul.f32 %v340, %v355
  %v358 = vpack.c.bf16 %v357, %v357
  %v360 = vsel %vm218, %v358, 0
  %362 = vmatprep.subr.bf16.mxu0 0
  %363 = vmatpush1.bf16.msra.mxu0 0
  %364 = vmatprep.subr.bf16.mxu0 0
  %365 = vmatpush1.bf16.msra.mxu0 0
  %366 = vmatprep.subr.bf16.mxu0 0
  %367 = vmatpush1.bf16.msra.mxu0 0
  %368 = vmatprep.subr.bf16.mxu0 0
  %369 = vmatpush1.bf16.msra.mxu0 0
  %370 = vmatprep.subr.bf16.mxu0 %v209
  %371 = vmatpush1.bf16.msra.mxu0 %v208
  %372 = vmatprep.subr.bf16.mxu0 %v207
  %373 = vmatpush1.bf16.msra.mxu0 %v206
  %374 = vmatprep.subr.bf16.mxu0 %v205
  %375 = vmatpush1.bf16.msra.mxu0 %v204
  %376 = vmatprep.subr.bf16.mxu0 %v203
  %377 = vmatpush1.bf16.msra.mxu0 %v202
  %378 = vmatprep.subr.bf16.mxu0 0
  %379 = vmatpush2.bf16.msra.mxu0 0
  %380 = vmatprep.subr.bf16.mxu0 0
  %381 = vmatpush2.bf16.msra.mxu0 0
  %382 = vmatprep.subr.bf16.mxu0 0
  %383 = vmatpush2.bf16.msra.mxu0 0
  %384 = vmatprep.subr.bf16.mxu0 0
  %385 = vmatpush2.bf16.msra.mxu0 0
  %386 = vmatprep.subr.bf16.mxu0 0
  %387 = vmatpush2.bf16.msra.mxu0 0
  %388 = vmatprep.subr.bf16.mxu0 0
  %389 = vmatpush2.bf16.msra.mxu0 0
  %390 = vmatprep.subr.bf16.mxu0 0
  %391 = vmatpush2.bf16.msra.mxu0 0
  %392 = vmatprep.subr.bf16.mxu0 0
  %393 = vmatpush2.bf16.msra.mxu0 0
  %394 = vmatprep.mubr.bf16.mxu0 0
  %395 = vmatmul.mubr.bf16.gmra.mxu0 %v360
  %v396 = vpop.f32.mrf.mxu0
  %v397 = vadd.f32 0.0, %v396
  %v398 = vpop.f32.mrf.mxu0
  %v399 = vadd.f32 0.0, %v398
  %v400 = vpop.f32.mrf.mxu0
  %v401 = vpop.f32.mrf.mxu0
  %402 = vdwg.mxu0
  %v403 = vadd.f32 %v150, %v397
  %v404 = vadd.f32 %v152, %v399
  %v405 = vtanh.pop %v403
  %v406 = vtanh.pop %v404
  %v407 = vadd.f32 %v405, 1.0
  %v408 = vadd.f32 %v406, 1.0
  %v409 = vmul.f32 %v407, 0.5
  %v410 = vmul.f32 %v408, 0.5
  %v411 = vmul.f32 %v409, %v351
  %413 = vrot.lane.b32.xlu0 %v406, 64
  %v414 = vpop.permute.xlu0 %413
  %v416 = vmul.f32 %v409, %v414
  %418 = vrot.lane.b32.xlu0 %v416, 64
  %v419 = vpop.permute.xlu0 %418
  %v421 = vadd.f32 %v411, %v419
  %v422 = vtanh.pop %v421
  %424 = vrot.lane.b32.xlu0 %v422, 64
  %v425 = vpop.permute.xlu0 %424
  %v427 = vmul.f32 %v410, %v425
  %v428 = vpack.c.bf16 %v427, %v427
  %v430 = vsel %vm218, %v428, 0
  %432 = vmatprep.subr.bf16.mxu0 0
  %433 = vmatpush1.bf16.msra.mxu0 0
  %434 = vmatprep.subr.bf16.mxu0 0
  %435 = vmatpush1.bf16.msra.mxu0 0
  %436 = vmatprep.subr.bf16.mxu0 0
  %437 = vmatpush1.bf16.msra.mxu0 0
  %438 = vmatprep.subr.bf16.mxu0 0
  %439 = vmatpush1.bf16.msra.mxu0 0
  %440 = vmatprep.subr.bf16.mxu0 %v209
  %441 = vmatpush1.bf16.msra.mxu0 %v208
  %442 = vmatprep.subr.bf16.mxu0 %v207
  %443 = vmatpush1.bf16.msra.mxu0 %v206
  %444 = vmatprep.subr.bf16.mxu0 %v205
  %445 = vmatpush1.bf16.msra.mxu0 %v204
  %446 = vmatprep.subr.bf16.mxu0 %v203
  %447 = vmatpush1.bf16.msra.mxu0 %v202
  %448 = vmatprep.subr.bf16.mxu0 0
  %449 = vmatpush2.bf16.msra.mxu0 0
  %450 = vmatprep.subr.bf16.mxu0 0
  %451 = vmatpush2.bf16.msra.mxu0 0
  %452 = vmatprep.subr.bf16.mxu0 0
  %453 = vmatpush2.bf16.msra.mxu0 0
  %454 = vmatprep.subr.bf16.mxu0 0
  %455 = vmatpush2.bf16.msra.mxu0 0
  %456 = vmatprep.subr.bf16.mxu0 0
  %457 = vmatpush2.bf16.msra.mxu0 0
  %458 = vmatprep.subr.bf16.mxu0 0
  %459 = vmatpush2.bf16.msra.mxu0 0
  %460 = vmatprep.subr.bf16.mxu0 0
  %461 = vmatpush2.bf16.msra.mxu0 0
  %462 = vmatprep.subr.bf16.mxu0 0
  %463 = vmatpush2.bf16.msra.mxu0 0
  %464 = vmatprep.mubr.bf16.mxu0 0
  %465 = vmatmul.mubr.bf16.gmra.mxu0 %v430
  %v466 = vpop.f32.mrf.mxu0
  %v467 = vadd.f32 0.0, %v466
  %v468 = vpop.f32.mrf.mxu0
  %v469 = vadd.f32 0.0, %v468
  %v470 = vpop.f32.mrf.mxu0
  %v471 = vpop.f32.mrf.mxu0
  %472 = vdwg.mxu0
  %v473 = vadd.f32 %v154, %v467
  %v474 = vadd.f32 %v156, %v469
  %v475 = vtanh.pop %v473
  %v476 = vtanh.pop %v474
  %v477 = vadd.f32 %v475, 1.0
  %v478 = vadd.f32 %v476, 1.0
  %v479 = vmul.f32 %v477, 0.5
  %v480 = vmul.f32 %v478, 0.5
  %v481 = vmul.f32 %v479, %v421
  %483 = vrot.lane.b32.xlu0 %v476, 64
  %v484 = vpop.permute.xlu0 %483
  %v486 = vmul.f32 %v479, %v484
  %488 = vrot.lane.b32.xlu0 %v486, 64
  %v489 = vpop.permute.xlu0 %488
  %v491 = vadd.f32 %v481, %v489
  %v492 = vtanh.pop %v491
  %494 = vrot.lane.b32.xlu0 %v492, 64
  %v495 = vpop.permute.xlu0 %494
  %v497 = vmul.f32 %v480, %v495
  %v498 = vpack.c.bf16 %v497, %v497
  %v500 = vsel %vm218, %v498, 0
  %502 = vmatprep.subr.bf16.mxu0 0
  %503 = vmatpush1.bf16.msra.mxu0 0
  %504 = vmatprep.subr.bf16.mxu0 0
  %505 = vmatpush1.bf16.msra.mxu0 0
  %506 = vmatprep.subr.bf16.mxu0 0
  %507 = vmatpush1.bf16.msra.mxu0 0
  %508 = vmatprep.subr.bf16.mxu0 0
  %509 = vmatpush1.bf16.msra.mxu0 0
  %510 = vmatprep.subr.bf16.mxu0 %v209
  %511 = vmatpush1.bf16.msra.mxu0 %v208
  %512 = vmatprep.subr.bf16.mxu0 %v207
  %513 = vmatpush1.bf16.msra.mxu0 %v206
  %514 = vmatprep.subr.bf16.mxu0 %v205
  %515 = vmatpush1.bf16.msra.mxu0 %v204
  %516 = vmatprep.subr.bf16.mxu0 %v203
  %517 = vmatpush1.bf16.msra.mxu0 %v202
  %518 = vmatprep.subr.bf16.mxu0 0
  %519 = vmatpush2.bf16.msra.mxu0 0
  %520 = vmatprep.subr.bf16.mxu0 0
  %521 = vmatpush2.bf16.msra.mxu0 0
  %522 = vmatprep.subr.bf16.mxu0 0
  %523 = vmatpush2.bf16.msra.mxu0 0
  %524 = vmatprep.subr.bf16.mxu0 0
  %525 = vmatpush2.bf16.msra.mxu0 0
  %526 = vmatprep.subr.bf16.mxu0 0
  %527 = vmatpush2.bf16.msra.mxu0 0
  %528 = vmatprep.subr.bf16.mxu0 0
  %529 = vmatpush2.bf16.msra.mxu0 0
  %530 = vmatprep.subr.bf16.mxu0 0
  %531 = vmatpush2.bf16.msra.mxu0 0
  %532 = vmatprep.subr.bf16.mxu0 0
  %533 = vmatpush2.bf16.msra.mxu0 0
  %534 = vmatprep.mubr.bf16.mxu0 0
  %535 = vmatmul.mubr.bf16.gmra.mxu0 %v500
  %v536 = vpop.f32.mrf.mxu0
  %v537 = vadd.f32 0.0, %v536
  %v538 = vpop.f32.mrf.mxu0
  %v539 = vadd.f32 0.0, %v538
  %v540 = vpop.f32.mrf.mxu0
  %v541 = vpop.f32.mrf.mxu0
  %542 = vdwg.mxu0
  %v543 = vadd.f32 %v160, %v537
  %v544 = vadd.f32 %v162, %v539
  %v545 = vtanh.pop %v543
  %v546 = vtanh.pop %v544
  %v547 = vadd.f32 %v545, 1.0
  %v548 = vadd.f32 %v546, 1.0
  %v549 = vmul.f32 %v547, 0.5
  %v550 = vmul.f32 %v548, 0.5
  %v551 = vmul.f32 %v549, %v491
  %553 = vrot.lane.b32.xlu0 %v546, 64
  %v554 = vpop.permute.xlu0 %553
  %v556 = vmul.f32 %v549, %v554
  %558 = vrot.lane.b32.xlu0 %v556, 64
  %v559 = vpop.permute.xlu0 %558
  %v561 = vadd.f32 %v551, %v559
  %v562 = vtanh.pop %v561
  %564 = vrot.lane.b32.xlu0 %v562, 64
  %v565 = vpop.permute.xlu0 %564
  %v567 = vmul.f32 %v550, %v565
  %v568 = vpack.c.bf16 %v567, %v567
  %v570 = vsel %vm218, %v568, 0
  %572 = vmatprep.subr.bf16.mxu0 0
  %573 = vmatpush1.bf16.msra.mxu0 0
  %574 = vmatprep.subr.bf16.mxu0 0
  %575 = vmatpush1.bf16.msra.mxu0 0
  %576 = vmatprep.subr.bf16.mxu0 0
  %577 = vmatpush1.bf16.msra.mxu0 0
  %578 = vmatprep.subr.bf16.mxu0 0
  %579 = vmatpush1.bf16.msra.mxu0 0
  %580 = vmatprep.subr.bf16.mxu0 %v209
  %581 = vmatpush1.bf16.msra.mxu0 %v208
  %582 = vmatprep.subr.bf16.mxu0 %v207
  %583 = vmatpush1.bf16.msra.mxu0 %v206
  %584 = vmatprep.subr.bf16.mxu0 %v205
  %585 = vmatpush1.bf16.msra.mxu0 %v204
  %586 = vmatprep.subr.bf16.mxu0 %v203
  %587 = vmatpush1.bf16.msra.mxu0 %v202
  %588 = vmatprep.subr.bf16.mxu0 0
  %589 = vmatpush2.bf16.msra.mxu0 0
  %590 = vmatprep.subr.bf16.mxu0 0
  %591 = vmatpush2.bf16.msra.mxu0 0
  %592 = vmatprep.subr.bf16.mxu0 0
  %593 = vmatpush2.bf16.msra.mxu0 0
  %594 = vmatprep.subr.bf16.mxu0 0
  %595 = vmatpush2.bf16.msra.mxu0 0
  %596 = vmatprep.subr.bf16.mxu0 0
  %597 = vmatpush2.bf16.msra.mxu0 0
  %598 = vmatprep.subr.bf16.mxu0 0
  %599 = vmatpush2.bf16.msra.mxu0 0
  %600 = vmatprep.subr.bf16.mxu0 0
  %601 = vmatpush2.bf16.msra.mxu0 0
  %602 = vmatprep.subr.bf16.mxu0 0
  %603 = vmatpush2.bf16.msra.mxu0 0
  %604 = vmatprep.mubr.bf16.mxu0 0
  %605 = vmatmul.mubr.bf16.gmra.mxu0 %v570
  %v606 = vpop.f32.mrf.mxu0
  %v607 = vadd.f32 0.0, %v606
  %v608 = vpop.f32.mrf.mxu0
  %v609 = vadd.f32 0.0, %v608
  %v610 = vpop.f32.mrf.mxu0
  %v611 = vpop.f32.mrf.mxu0
  %612 = vdwg.mxu0
  %v613 = vadd.f32 %v164, %v607
  %v614 = vadd.f32 %v166, %v609
  %v615 = vtanh.pop %v613
  %v616 = vtanh.pop %v614
  %v617 = vadd.f32 %v615, 1.0
  %v618 = vadd.f32 %v616, 1.0
  %v619 = vmul.f32 %v617, 0.5
  %v620 = vmul.f32 %v618, 0.5
  %v621 = vmul.f32 %v619, %v561
  %623 = vrot.lane.b32.xlu0 %v616, 64
  %v624 = vpop.permute.xlu0 %623
  %v626 = vmul.f32 %v619, %v624
  %628 = vrot.lane.b32.xlu0 %v626, 64
  %v629 = vpop.permute.xlu0 %628
  %v631 = vadd.f32 %v621, %v629
  %v632 = vtanh.pop %v631
  %634 = vrot.lane.b32.xlu0 %v632, 64
  %v635 = vpop.permute.xlu0 %634
  %v637 = vmul.f32 %v620, %v635
  %v638 = vpack.c.bf16 %v637, %v637
  %v640 = vsel %vm218, %v638, 0
  %642 = vmatprep.subr.bf16.mxu0 0
  %643 = vmatpush1.bf16.msra.mxu0 0
  %644 = vmatprep.subr.bf16.mxu0 0
  %645 = vmatpush1.bf16.msra.mxu0 0
  %646 = vmatprep.subr.bf16.mxu0 0
  %647 = vmatpush1.bf16.msra.mxu0 0
  %648 = vmatprep.subr.bf16.mxu0 0
  %649 = vmatpush1.bf16.msra.mxu0 0
  %650 = vmatprep.subr.bf16.mxu0 %v209
  %651 = vmatpush1.bf16.msra.mxu0 %v208
  %652 = vmatprep.subr.bf16.mxu0 %v207
  %653 = vmatpush1.bf16.msra.mxu0 %v206
  %654 = vmatprep.subr.bf16.mxu0 %v205
  %655 = vmatpush1.bf16.msra.mxu0 %v204
  %656 = vmatprep.subr.bf16.mxu0 %v203
  %657 = vmatpush1.bf16.msra.mxu0 %v202
  %658 = vmatprep.subr.bf16.mxu0 0
  %659 = vmatpush2.bf16.msra.mxu0 0
  %660 = vmatprep.subr.bf16.mxu0 0
  %661 = vmatpush2.bf16.msra.mxu0 0
  %662 = vmatprep.subr.bf16.mxu0 0
  %663 = vmatpush2.bf16.msra.mxu0 0
  %664 = vmatprep.subr.bf16.mxu0 0
  %665 = vmatpush2.bf16.msra.mxu0 0
  %666 = vmatprep.subr.bf16.mxu0 0
  %667 = vmatpush2.bf16.msra.mxu0 0
  %668 = vmatprep.subr.bf16.mxu0 0
  %669 = vmatpush2.bf16.msra.mxu0 0
  %670 = vmatprep.subr.bf16.mxu0 0
  %671 = vmatpush2.bf16.msra.mxu0 0
  %672 = vmatprep.subr.bf16.mxu0 0
  %673 = vmatpush2.bf16.msra.mxu0 0
  %674 = vmatprep.mubr.bf16.mxu0 0
  %675 = vmatmul.mubr.bf16.gmra.mxu0 %v640
  %v676 = vpop.f32.mrf.mxu0
  %v677 = vadd.f32 0.0, %v676
  %v678 = vpop.f32.mrf.mxu0
  %v679 = vadd.f32 0.0, %v678
  %v680 = vpop.f32.mrf.mxu0
  %v681 = vpop.f32.mrf.mxu0
  %682 = vdwg.mxu0
  %v683 = vadd.f32 %v170, %v677
  %v684 = vadd.f32 %v172, %v679
  %v685 = vtanh.pop %v683
  %v686 = vtanh.pop %v684
  %v687 = vadd.f32 %v685, 1.0
  %v688 = vadd.f32 %v686, 1.0
  %v689 = vmul.f32 %v687, 0.5
  %v690 = vmul.f32 %v688, 0.5
  %v691 = vmul.f32 %v689, %v631
  %693 = vrot.lane.b32.xlu0 %v686, 64
  %v694 = vpop.permute.xlu0 %693
  %v696 = vmul.f32 %v689, %v694
  %698 = vrot.lane.b32.xlu0 %v696, 64
  %v699 = vpop.permute.xlu0 %698
  %v701 = vadd.f32 %v691, %v699
  %v702 = vtanh.pop %v701
  %704 = vrot.lane.b32.xlu0 %v702, 64
  %v705 = vpop.permute.xlu0 %704
  %v707 = vmul.f32 %v690, %v705
  %v708 = vpack.c.bf16 %v707, %v707
  %v710 = vsel %vm218, %v708, 0
  %712 = vmatprep.subr.bf16.mxu0 0
  %713 = vmatpush1.bf16.msra.mxu0 0
  %714 = vmatprep.subr.bf16.mxu0 0
  %715 = vmatpush1.bf16.msra.mxu0 0
  %716 = vmatprep.subr.bf16.mxu0 0
  %717 = vmatpush1.bf16.msra.mxu0 0
  %718 = vmatprep.subr.bf16.mxu0 0
  %719 = vmatpush1.bf16.msra.mxu0 0
  %720 = vmatprep.subr.bf16.mxu0 %v209
  %721 = vmatpush1.bf16.msra.mxu0 %v208
  %722 = vmatprep.subr.bf16.mxu0 %v207
  %723 = vmatpush1.bf16.msra.mxu0 %v206
  %724 = vmatprep.subr.bf16.mxu0 %v205
  %725 = vmatpush1.bf16.msra.mxu0 %v204
  %726 = vmatprep.subr.bf16.mxu0 %v203
  %727 = vmatpush1.bf16.msra.mxu0 %v202
  %728 = vmatprep.subr.bf16.mxu0 0
  %729 = vmatpush2.bf16.msra.mxu0 0
  %730 = vmatprep.subr.bf16.mxu0 0
  %731 = vmatpush2.bf16.msra.mxu0 0
  %732 = vmatprep.subr.bf16.mxu0 0
  %733 = vmatpush2.bf16.msra.mxu0 0
  %734 = vmatprep.subr.bf16.mxu0 0
  %735 = vmatpush2.bf16.msra.mxu0 0
  %736 = vmatprep.subr.bf16.mxu0 0
  %737 = vmatpush2.bf16.msra.mxu0 0
  %738 = vmatprep.subr.bf16.mxu0 0
  %739 = vmatpush2.bf16.msra.mxu0 0
  %740 = vmatprep.subr.bf16.mxu0 0
  %741 = vmatpush2.bf16.msra.mxu0 0
  %742 = vmatprep.subr.bf16.mxu0 0
  %743 = vmatpush2.bf16.msra.mxu0 0
  %744 = vmatprep.mubr.bf16.mxu0 0
  %745 = vmatmul.mubr.bf16.gmra.mxu0 %v710
  %v746 = vpop.f32.mrf.mxu0
  %v747 = vadd.f32 0.0, %v746
  %v748 = vpop.f32.mrf.mxu0
  %v749 = vadd.f32 0.0, %v748
  %v750 = vpop.f32.mrf.mxu0
  %v751 = vpop.f32.mrf.mxu0
  %752 = vdwg.mxu0
  %v753 = vadd.f32 %v174, %v747
  %v754 = vadd.f32 %v176, %v749
  %v755 = vtanh.pop %v753
  %v756 = vtanh.pop %v754
  %v757 = vadd.f32 %v755, 1.0
  %v758 = vadd.f32 %v756, 1.0
  %v759 = vmul.f32 %v757, 0.5
  %v760 = vmul.f32 %v758, 0.5
  %v761 = vmul.f32 %v759, %v701
  %763 = vrot.lane.b32.xlu0 %v756, 64
  %v764 = vpop.permute.xlu0 %763
  %v766 = vmul.f32 %v759, %v764
  %768 = vrot.lane.b32.xlu0 %v766, 64
  %v769 = vpop.permute.xlu0 %768
  %v771 = vadd.f32 %v761, %v769
  %v772 = vtanh.pop %v771
  %774 = vrot.lane.b32.xlu0 %v772, 64
  %v775 = vpop.permute.xlu0 %774
  %v777 = vmul.f32 %v760, %v775
  %v778 = vpack.c.bf16 %v777, %v777
  %v779 = vld [vmem:[%s4] sm:$0xf]
  %v780 = vld [vmem:[%s4 + $0x4] sm:$0xf]
  %v781 = vld [vmem:[%s4 + $0x8] sm:$0xf]
  %v782 = vld [vmem:[%s4 + $0xc] sm:$0xf]
  %v783 = vld [vmem:[%s4 + $0x10] sm:$0xf]
  %v784 = vld [vmem:[%s4 + $0x14] sm:$0xf]
  %v785 = vld [vmem:[%s4 + $0x18] sm:$0xf]
  %v786 = vld [vmem:[%s4 + $0x1c] sm:$0xf]
  %v787 = vld [vmem:[%s5] sm:$0x1]
  %v789 = vlaneseq
  %v790 = vshrl.u32 %v789, 7
  %v791 = vsub.s32 0, %v790
  %v792 = vrot.slane %v787, %v791
  %v802 = vunpack.c.l.b16 %v779
  %v803 = vunpack.c.l.b16 %v780
  %v804 = vunpack.c.l.b16 %v781
  %v805 = vunpack.c.l.b16 %v782
  %v806 = vunpack.c.l.b16 %v783
  %v807 = vunpack.c.l.b16 %v784
  %v808 = vunpack.c.l.b16 %v785
  %v809 = vunpack.c.l.b16 %v786
  %v810 = vpack.c.b16 %v803, %v802
  %v811 = vpack.c.b16 %v805, %v804
  %v812 = vpack.c.b16 %v807, %v806
  %v813 = vpack.c.b16 %v809, %v808
  %v819 = vsel %vm218, %v778, 0
  %821 = vmatprep.subr.bf16.mxu0 0
  %822 = vmatpush1.bf16.msra.mxu0 0
  %823 = vmatprep.subr.bf16.mxu0 0
  %824 = vmatpush1.bf16.msra.mxu0 0
  %825 = vmatprep.subr.bf16.mxu0 0
  %826 = vmatpush1.bf16.msra.mxu0 0
  %827 = vmatprep.subr.bf16.mxu0 0
  %828 = vmatpush1.bf16.msra.mxu0 0
  %829 = vmatprep.subr.bf16.mxu0 0
  %830 = vmatpush1.bf16.msra.mxu0 %v813
  %831 = vmatprep.subr.bf16.mxu0 0
  %832 = vmatpush1.bf16.msra.mxu0 %v812
  %833 = vmatprep.subr.bf16.mxu0 0
  %834 = vmatpush1.bf16.msra.mxu0 %v811
  %835 = vmatprep.subr.bf16.mxu0 0
  %836 = vmatpush1.bf16.msra.mxu0 %v810
  %837 = vmatprep.subr.bf16.mxu0 0
  %838 = vmatpush2.bf16.msra.mxu0 0
  %839 = vmatprep.subr.bf16.mxu0 0
  %840 = vmatpush2.bf16.msra.mxu0 0
  %841 = vmatprep.subr.bf16.mxu0 0
  %842 = vmatpush2.bf16.msra.mxu0 0
  %843 = vmatprep.subr.bf16.mxu0 0
  %844 = vmatpush2.bf16.msra.mxu0 0
  %845 = vmatprep.subr.bf16.mxu0 0
  %846 = vmatpush2.bf16.msra.mxu0 0
  %847 = vmatprep.subr.bf16.mxu0 0
  %848 = vmatpush2.bf16.msra.mxu0 0
  %849 = vmatprep.subr.bf16.mxu0 0
  %850 = vmatpush2.bf16.msra.mxu0 0
  %851 = vmatprep.subr.bf16.mxu0 0
  %852 = vmatpush2.bf16.msra.mxu0 0
  %853 = vmatprep.mubr.bf16.mxu0 0
  %854 = vmatmul.mubr.bf16.gmra.mxu0 %v819
  %v855 = vpop.f32.mrf.mxu0
  %v856 = vadd.f32 %v792, %v855
  %v857 = vpop.f32.mrf.mxu0
  %v858 = vpop.f32.mrf.mxu0
  %v859 = vpop.f32.mrf.mxu0
  %860 = vdwg.mxu0
  %v861 = vmul.f32 %v856, 0.5
  %v862 = vmul.f32 %v861, 1.442695
  %v863 = vpow.pop %v862
  %v864 = vld [vmem:[%s6] sm:$0xff]
  %866 = vrot.lane.b32.xlu0 %v864, 16
  %v867 = vpop.permute.xlu0 %866
  %v869 = vmul.f32 %v863, %v867
  %871 = vrot.lane.b32.xlu0 %v869, 112
  %v872 = vpop.permute.xlu0 %871
  %v874 = vadd.f32 %v856, %v872
  %876 = vrot.lane.b32.xlu0 %v856, 16
  %v877 = vpop.permute.xlu0 %876
  %vm879 = vcmask 130048
  %v880 = vsel %vm879, %v874, %v877
  %vm881 = vcmask 392192
  %882 = vst.msk [vmem:[%s7] sm:$0xff] %vm881, %v880
  // Predicated region
  $region30: #{encoder_forward.1} parent=0 // pred_check
    _
  $region31: #{encoder_forward.1} parent=0 // pred_check_branch
    %884 = sbr.rel (0) target = $region33
  $region32: #{encoder_forward.1} parent=0 // pred_region
    _
  $region33: #{encoder_forward.1} parent=0 // pred_fallthru
    _
  // Predicated region
  $region34: #{encoder_forward.1} parent=0 // pred_check
    _
  $region35: #{encoder_forward.1} parent=0 // pred_check_branch
    %886 = sbr.rel (0) target = $region37
  $region36: #{encoder_forward.1} parent=0 // pred_region
    _
  $region37: #{encoder_forward.1} parent=0 // pred_fallthru
    _

</llo_original>
